<compile_context>
chip_gen: v5e
topology: v5e:2x2
jax: 0.10.0
libtpu: 0.0.40
codegen_flags: <defaults>
</compile_context>

<pallas_src>
import functools

import jax
import jax.numpy as jnp
from jax.experimental import pallas as pl
from jax.experimental.pallas import tpu as pltpu


def _round_up(x: int, m: int) -> int:
    return (x + m - 1) // m * m


def _acos(c):
    """float32 arccos from mul/add/sqrt/select (Cephes asinf-style poly).

    Keeps the acos epilogue fused in-kernel without relying on an acos/atan2
    Mosaic lowering; max abs error vs libm ~5e-7 over [-1, 1].
    """
    # TODO(synk): swap for jnp.arccos if/when lax.acos lowers natively in Mosaic.
    a = jnp.abs(c)
    big = a > 0.5
    z_small = a * a
    z_big = 0.5 * (1.0 - a)
    z = jnp.where(big, z_big, z_small)
    x = jnp.where(big, jnp.sqrt(z_big), a)
    p = ((((4.2163199048e-2 * z + 2.4181311049e-2) * z + 4.5470025998e-2) * z
          + 7.4953002686e-2) * z + 1.6666752422e-1) * z * x + x
    acos_abs = jnp.where(big, 2.0 * p, jnp.float32(jnp.pi / 2) - p)
    return jnp.where(c < 0.0, jnp.float32(jnp.pi) - acos_abs, acos_abs)


def _sphereface_kernel(x_ref, w_ref, o_ref, xn2_ref, wn2_ref, *, eps):
    k = pl.program_id(2)

    x = x_ref[...]                       # (tm, tk), compute_dtype
    w = w_ref[...]                       # (tk, tn), compute_dtype (pre-transposed)

    # Plain MK x KN MXU contraction, f32 accumulation.
    partial = jnp.dot(x, w, preferred_element_type=jnp.float32)

    # Squared-norm partials of exactly the data that feeds the MXU: VPU mul +
    # XLU reduce on tiles already resident in VMEM.  Recomputed per (i, j)
    # block pair (redundant but negligible vs the matmul) so there is no
    # cross-block scratch dependence -> safe under megacore "parallel" axes.
    xf = x.astype(jnp.float32)
    wf = w.astype(jnp.float32)
    xn2_part = jnp.sum(xf * xf, axis=1, keepdims=True)   # (tm, 1)
    wn2_part = jnp.sum(wf * wf, axis=0, keepdims=True)   # (1, tn)

    # Output block index (i, j) is constant across k, so o_ref stays resident
    # in VMEM across the K loop: accumulate straight into it (it is f32).
    @pl.when(k == 0)
    def _init():
        o_ref[...] = partial
        xn2_ref[...] = xn2_part
        wn2_ref[...] = wn2_part

    @pl.when(k > 0)
    def _accum():
        o_ref[...] += partial
        xn2_ref[...] += xn2_part
        wn2_ref[...] += wn2_part

    @pl.when(k == pl.num_programs(2) - 1)
    def _finalize():
        # 1/max(||x||*||w||, eps) == rsqrt(max(||x||^2 * ||w||^2, eps^2)):
        # one EUP rsqrt instead of two sqrts + a vector divide.
        denom2 = jnp.maximum(xn2_ref[...] * wn2_ref[...], eps * eps)
        cosine = o_ref[...] * jax.lax.rsqrt(denom2)
        # Clamp: low-precision streaming (or f32 rounding for near-parallel
        # rows) can push |cosine| a few ULP above 1 -> NaN in acos otherwise.
        cosine = jnp.clip(cosine, -1.0, 1.0)
        o_ref[...] = _acos(cosine).astype(o_ref.dtype)


def sphereface_forward(inputs, label, weight, s=30.0, m=0.4, eps=1e-8, *,
                       compute_dtype=jnp.bfloat16,
                       block_m=512, block_n=1024, block_k=1024):
    """Pallas-TPU SphereFace.forward: acos(cosine_sim(inputs, weight)).

    label/s/m are accepted for API parity but (as in the torch module) do not
    influence the result.  The matmul streams x/w in `compute_dtype` (bf16 by
    default: halves HBM traffic, native MXU rate) with f32 accumulation and
    f32 norm partials; pass compute_dtype=jnp.float32 for exact-f32 math.
    """
    del label, s, m
    b, d = inputs.shape
    c, d2 = weight.shape
    assert d == d2, (inputs.shape, weight.shape)

    itemsize = jnp.dtype(compute_dtype).itemsize
    sub = {4: 8, 2: 16, 1: 32}[itemsize]     # sublane packing of compute_dtype

    # Lane-dense tiles: tm a multiple of the sublane pack, tn/tk multiples of
    # 128 (defaults are multiples of 256 to fill the 2x256x256 MXU of v6e/v7x).
    tm = min(_round_up(block_m, sub), _round_up(b, sub))
    tn = min(_round_up(block_n, 128), _round_up(c, 128))
    tk = min(_round_up(block_k, 128), _round_up(d, 128))

    # Conservative double-buffered VMEM footprint: input buffers, resident f32
    # output block, norm scratch, plus f32 temps for the in-kernel norm
    # reduction.  Shrink K then N until it fits a budget that is safe on
    # v7x's 64 MiB physical VMEM (and trivially on v5e/v6e's 128 MiB).
    def footprint(tm_, tn_, tk_):
        bufs = 2 * (tm_ * tk_ + tk_ * tn_) * itemsize + 2 * tm_ * tn_ * 4
        scratch = tm_ * 128 * 4 + 8 * tn_ * 4
        temps = (tm_ * tk_ + tk_ * tn_) * 4
        return bufs + scratch + temps

    budget = 40 * 1024 * 1024
    while footprint(tm, tn, tk) > budget and tk > 512:
        tk //= 2
    while footprint(tm, tn, tk) > budget and tn > 512:
        tn //= 2
    while footprint(tm, tn, tk) > budget and tm > sub:
        tm = max(sub, _round_up(tm // 2, sub))

    bp, cp, dp = _round_up(b, tm), _round_up(c, tn), _round_up(d, tk)

    # Single wrapper pass over each operand: cast to compute_dtype, transpose
    # the weight once to (D, C) (fuses with the cast/pad copy) so the kernel
    # is a plain MKxKN contraction with no per-k-step transpose, pad only when
    # needed.  Norms are computed inside the kernel from the streamed tiles,
    # so there is no extra f32 HBM pass over x/w here.
    x_p = inputs.astype(compute_dtype)
    if (bp, dp) != (b, d):
        x_p = jnp.pad(x_p, ((0, bp - b), (0, dp - d)))
    w_p = weight.astype(compute_dtype).T
    if (dp, cp) != (d, c):
        w_p = jnp.pad(w_p, ((0, dp - d), (0, cp - c)))

    grid = (bp // tm, cp // tn, dp // tk)

    # bytes_accessed accounts for re-streaming: x is re-read once per j block,
    # w once per i block; the f32 output is written once.
    cost = pl.CostEstimate(
        flops=2 * bp * cp * dp,
        transcendentals=bp * cp,
        bytes_accessed=(grid[1] * bp * dp + grid[0] * cp * dp) * itemsize
                       + bp * cp * 4)

    vmem_limit = min(48 * 1024 * 1024,
                     max(32 * 1024 * 1024, int(1.2 * footprint(tm, tn, tk))))

    # TODO(synk): if a profile shows exposed DMA on the K axis, add
    # pipeline_mode=pl.Buffered(3) on the weight BlockSpec; on v7x an fp8
    # compute_dtype path would halve HBM traffic again if the acos error
    # budget tolerates it.
    out = pl.pallas_call(
        functools.partial(_sphereface_kernel, eps=float(eps)),
        out_shape=jax.ShapeDtypeStruct((bp, cp), jnp.float32),
        grid_spec=pltpu.PrefetchScalarGridSpec(
            num_scalar_prefetch=0,
            grid=grid,
            in_specs=[
                pl.BlockSpec((tm, tk), lambda i, j, k: (i, k)),   # x tile
                pl.BlockSpec((tk, tn), lambda i, j, k: (k, j)),   # w^T tile
            ],
            out_specs=pl.BlockSpec((tm, tn), lambda i, j, k: (i, j)),
            scratch_shapes=[pltpu.VMEM((tm, 1), jnp.float32),     # ||x||^2
                            pltpu.VMEM((1, tn), jnp.float32)],    # ||w||^2
        ),
        compiler_params=pltpu.CompilerParams(
            dimension_semantics=("parallel", "parallel", "arbitrary"),
            vmem_limit_bytes=vmem_limit),
        cost_estimate=cost,
    )(x_p, w_p)

    return out[:b, :c]


if __name__ == "__main__":
    B, IN_FEATURES, OUT_FEATURES = 8, 32, 16

    key = jax.random.PRNGKey(0)
    kx, kw, kl = jax.random.split(key, 3)

    x = jax.random.normal(kx, (B, IN_FEATURES), dtype=jnp.float32)
    # Deterministic xavier_uniform_-style init for (out_features, in_features).
    bound = (6.0 / (IN_FEATURES + OUT_FEATURES)) ** 0.5
    weight = jax.random.uniform(
        kw, (OUT_FEATURES, IN_FEATURES), jnp.float32, minval=-bound, maxval=bound)
    label = jax.random.randint(kl, (B,), 0, OUT_FEATURES)  # unused by the math

    def ref_forward(xx, ww, mm_dtype):
        xc = xx.astype(mm_dtype).astype(jnp.float32)
        wc = ww.astype(mm_dtype).astype(jnp.float32)
        ip = jnp.dot(xx.astype(mm_dtype), ww.astype(mm_dtype).T,
                     preferred_element_type=jnp.float32)
        denom = jnp.maximum(
            jnp.outer(jnp.linalg.norm(xc, axis=1), jnp.linalg.norm(wc, axis=1)),
            1e-8)
        return jnp.arccos(jnp.clip(ip / denom, -1.0, 1.0))

    # Exact-precision (f32 streaming) path vs torch-style reference.
    out_f32 = jax.block_until_ready(
        sphereface_forward(x, label, weight, compute_dtype=jnp.float32))
    assert out_f32.shape == (B, OUT_FEATURES) and out_f32.dtype == jnp.float32
    ref_f32 = ref_forward(x, weight, jnp.float32)
    assert jnp.allclose(out_f32, ref_f32, atol=5e-4, rtol=5e-4), \
        float(jnp.max(jnp.abs(out_f32 - ref_f32)))

    # Default bf16-streaming path: tight check against a precision-matched
    # reference, plus a loose cross-check against the pure-f32 reference.
    out_bf16 = jax.block_until_ready(sphereface_forward(x, label, weight))
    ref_bf16 = ref_forward(x, weight, jnp.bfloat16)
    assert jnp.allclose(out_bf16, ref_bf16, atol=2e-3, rtol=2e-3), \
        float(jnp.max(jnp.abs(out_bf16 - ref_bf16)))
    assert jnp.allclose(out_bf16, ref_f32, atol=3e-2, rtol=3e-2), \
        float(jnp.max(jnp.abs(out_bf16 - ref_f32)))

    print("KERNEL_OK")
</pallas_src>

<mosaic_0001>
module attributes {stable_mosaic.version = 11 : i64} {
  func.func @_sphereface_kernel(%arg0: i32, %arg1: i32, %arg2: i32, %arg3: memref<8x128xf32, #tpu.memory_space<vmem>>, %arg4: memref<128x128xf32, #tpu.memory_space<vmem>>, %arg5: memref<8x128xf32, #tpu.memory_space<vmem>>, %arg6: memref<8x1xf32, #tpu.memory_space<vmem>>, %arg7: memref<1x128xf32, #tpu.memory_space<vmem>>) attributes {dimension_semantics = [#tpu.dimension_semantics<parallel>, #tpu.dimension_semantics<parallel>, #tpu.dimension_semantics<arbitrary>], iteration_bounds = array<i64: 1, 1, 1>, scalar_prefetch = 0 : i64, scratch_operands = 2 : i64, tpu.core_type = #tpu.core_type<tc>, window_params = [{transform_indices = @transform_0, window_bounds = array<i64: 8, 128>}, {transform_indices = @transform_1, window_bounds = array<i64: 128, 128>}, {transform_indices = @transform_2, window_bounds = array<i64: 8, 128>}]} {
    %c0 = arith.constant 0 : index
    %c0_0 = arith.constant 0 : index
    %0 = vector.load %arg3[%c0, %c0_0] : memref<8x128xf32, #tpu.memory_space<vmem>>, vector<8x128xf32>
    %c0_1 = arith.constant 0 : index
    %c0_2 = arith.constant 0 : index
    %1 = vector.load %arg4[%c0_1, %c0_2] : memref<128x128xf32, #tpu.memory_space<vmem>>, vector<128x128xf32>
    %cst = arith.constant dense<0.000000e+00> : vector<8x128xf32>
    %2 = tpu.matmul %0, %1, %cst {dimension_numbers = #tpu.dot_dimension_numbers<[1], [0], [0], [1], [0, 0, 1, 1], [], []>} : vector<8x128xf32>, vector<128x128xf32>, vector<8x128xf32> -> vector<8x128xf32>
    %3 = arith.mulf %0, %0 : vector<8x128xf32>
    %cst_3 = arith.constant dense<0.000000e+00> : vector<8xf32>
    %4 = vector.multi_reduction <add>, %3, %cst_3 [1] : vector<8x128xf32> to vector<8xf32>
    %5 = vector.shape_cast %4 : vector<8xf32> to vector<8x1xf32>
    %6 = arith.mulf %1, %1 : vector<128x128xf32>
    %cst_4 = arith.constant dense<0.000000e+00> : vector<128xf32>
    %7 = vector.multi_reduction <add>, %6, %cst_4 [0] : vector<128x128xf32> to vector<128xf32>
    %8 = vector.shape_cast %7 : vector<128xf32> to vector<1x128xf32>
    %c0_i32 = arith.constant 0 : i32
    %9 = arith.cmpi eq, %arg2, %c0_i32 : i32
    %10 = arith.extui %9 : i1 to i32
    %c0_i32_5 = arith.constant 0 : i32
    %11 = arith.cmpi ne, %10, %c0_i32_5 : i32
    scf.if %11 {
      %c0_10 = arith.constant 0 : index
      %c0_11 = arith.constant 0 : index
      %18 = vector.load %arg5[%c0_10, %c0_11] : memref<8x128xf32, #tpu.memory_space<vmem>>, vector<8x128xf32>
      tpu.vector_store %arg5[%c0_10, %c0_11], %2 {strides = array<i32>} : memref<8x128xf32, #tpu.memory_space<vmem>>, vector<8x128xf32>,
      %c0_12 = arith.constant 0 : index
      %c0_13 = arith.constant 0 : index
      %19 = vector.load %arg6[%c0_12, %c0_13] : memref<8x1xf32, #tpu.memory_space<vmem>>, vector<8x1xf32>
      tpu.vector_store %arg6[%c0_12, %c0_13], %5 {strides = array<i32>} : memref<8x1xf32, #tpu.memory_space<vmem>>, vector<8x1xf32>,
      %c0_14 = arith.constant 0 : index
      %c0_15 = arith.constant 0 : index
      %20 = vector.load %arg7[%c0_14, %c0_15] : memref<1x128xf32, #tpu.memory_space<vmem>>, vector<1x128xf32>
      tpu.vector_store %arg7[%c0_14, %c0_15], %8 {strides = array<i32>} : memref<1x128xf32, #tpu.memory_space<vmem>>, vector<1x128xf32>,
    } else {
    }
    %c0_i32_6 = arith.constant 0 : i32
    %12 = arith.cmpi sgt, %arg2, %c0_i32_6 : i32
    %13 = arith.extui %12 : i1 to i32
    %c0_i32_7 = arith.constant 0 : i32
    %14 = arith.cmpi ne, %13, %c0_i32_7 : i32
    scf.if %14 {
      %c0_10 = arith.constant 0 : index
      %c0_11 = arith.constant 0 : index
      %18 = vector.load %arg5[%c0_10, %c0_11] : memref<8x128xf32, #tpu.memory_space<vmem>>, vector<8x128xf32>
      %19 = arith.addf %18, %2 : vector<8x128xf32>
      %c0_12 = arith.constant 0 : index
      %c0_13 = arith.constant 0 : index
      %20 = vector.load %arg5[%c0_12, %c0_13] : memref<8x128xf32, #tpu.memory_space<vmem>>, vector<8x128xf32>
      tpu.vector_store %arg5[%c0_12, %c0_13], %19 {strides = array<i32>} : memref<8x128xf32, #tpu.memory_space<vmem>>, vector<8x128xf32>,
      %c0_14 = arith.constant 0 : index
      %c0_15 = arith.constant 0 : index
      %21 = vector.load %arg6[%c0_14, %c0_15] : memref<8x1xf32, #tpu.memory_space<vmem>>, vector<8x1xf32>
      %22 = arith.addf %21, %5 : vector<8x1xf32>
      %c0_16 = arith.constant 0 : index
      %c0_17 = arith.constant 0 : index
      %23 = vector.load %arg6[%c0_16, %c0_17] : memref<8x1xf32, #tpu.memory_space<vmem>>, vector<8x1xf32>
      tpu.vector_store %arg6[%c0_16, %c0_17], %22 {strides = array<i32>} : memref<8x1xf32, #tpu.memory_space<vmem>>, vector<8x1xf32>,
      %c0_18 = arith.constant 0 : index
      %c0_19 = arith.constant 0 : index
      %24 = vector.load %arg7[%c0_18, %c0_19] : memref<1x128xf32, #tpu.memory_space<vmem>>, vector<1x128xf32>
      %25 = arith.addf %24, %8 : vector<1x128xf32>
      %c0_20 = arith.constant 0 : index
      %c0_21 = arith.constant 0 : index
      %26 = vector.load %arg7[%c0_20, %c0_21] : memref<1x128xf32, #tpu.memory_space<vmem>>, vector<1x128xf32>
      tpu.vector_store %arg7[%c0_20, %c0_21], %25 {strides = array<i32>} : memref<1x128xf32, #tpu.memory_space<vmem>>, vector<1x128xf32>,
    } else {
    }
    %c0_i32_8 = arith.constant 0 : i32
    %15 = arith.cmpi eq, %arg2, %c0_i32_8 : i32
    %16 = arith.extui %15 : i1 to i32
    %c0_i32_9 = arith.constant 0 : i32
    %17 = arith.cmpi ne, %16, %c0_i32_9 : i32
    scf.if %17 {
      %c0_10 = arith.constant 0 : index
      %c0_11 = arith.constant 0 : index
      %18 = vector.load %arg6[%c0_10, %c0_11] : memref<8x1xf32, #tpu.memory_space<vmem>>, vector<8x1xf32>
      %c0_12 = arith.constant 0 : index
      %c0_13 = arith.constant 0 : index
      %19 = vector.load %arg7[%c0_12, %c0_13] : memref<1x128xf32, #tpu.memory_space<vmem>>, vector<1x128xf32>
      %20 = vector.broadcast %18 : vector<8x1xf32> to vector<8x128xf32>
      %21 = vector.broadcast %19 : vector<1x128xf32> to vector<8x128xf32>
      %22 = arith.mulf %20, %21 : vector<8x128xf32>
      %cst_14 = arith.constant 1.000000e-16 : f32
      %23 = vector.broadcast %cst_14 : f32 to vector<8x128xf32>
      %24 = arith.maximumf %22, %23 : vector<8x128xf32>
      %c0_15 = arith.constant 0 : index
      %c0_16 = arith.constant 0 : index
      %25 = vector.load %arg5[%c0_15, %c0_16] : memref<8x128xf32, #tpu.memory_space<vmem>>, vector<8x128xf32>
      %26 = math.rsqrt %24 : vector<8x128xf32>
      %27 = arith.mulf %25, %26 : vector<8x128xf32>
      %cst_17 = arith.constant -1.000000e+00 : f32
      %cst_18 = arith.constant 1.000000e+00 : f32
      %28 = vector.broadcast %cst_17 : f32 to vector<8x128xf32>
      %29 = arith.maximumf %28, %27 : vector<8x128xf32>
      %30 = vector.broadcast %cst_18 : f32 to vector<8x128xf32>
      %31 = arith.minimumf %30, %29 : vector<8x128xf32>
      %32 = math.absf %31 : vector<8x128xf32>
      %cst_19 = arith.constant 5.000000e-01 : f32
      %33 = vector.broadcast %cst_19 : f32 to vector<8x128xf32>
      %34 = arith.cmpf ogt, %32, %33 : vector<8x128xf32>
      %35 = arith.mulf %32, %32 : vector<8x128xf32>
      %cst_20 = arith.constant 1.000000e+00 : f32
      %36 = vector.broadcast %cst_20 : f32 to vector<8x128xf32>
      %37 = arith.subf %36, %32 : vector<8x128xf32>
      %cst_21 = arith.constant 5.000000e-01 : f32
      %38 = vector.broadcast %cst_21 : f32 to vector<8x128xf32>
      %39 = arith.mulf %38, %37 : vector<8x128xf32>
      %40 = arith.select %34, %39, %35 : vector<8x128xi1>, vector<8x128xf32>
      %41 = math.sqrt %39 : vector<8x128xf32>
      %42 = arith.select %34, %41, %32 : vector<8x128xi1>, vector<8x128xf32>
      %cst_22 = arith.constant 4.216320e-02 : f32
      %43 = vector.broadcast %cst_22 : f32 to vector<8x128xf32>
      %44 = arith.mulf %43, %40 : vector<8x128xf32>
      %cst_23 = arith.constant 0.024181312 : f32
      %45 = vector.broadcast %cst_23 : f32 to vector<8x128xf32>
      %46 = arith.addf %44, %45 : vector<8x128xf32>
      %47 = arith.mulf %46, %40 : vector<8x128xf32>
      %cst_24 = arith.constant 0.0454700254 : f32
      %48 = vector.broadcast %cst_24 : f32 to vector<8x128xf32>
      %49 = arith.addf %47, %48 : vector<8x128xf32>
      %50 = arith.mulf %49, %40 : vector<8x128xf32>
      %cst_25 = arith.constant 0.0749530047 : f32
      %51 = vector.broadcast %cst_25 : f32 to vector<8x128xf32>
      %52 = arith.addf %50, %51 : vector<8x128xf32>
      %53 = arith.mulf %52, %40 : vector<8x128xf32>
      %cst_26 = arith.constant 0.166667521 : f32
      %54 = vector.broadcast %cst_26 : f32 to vector<8x128xf32>
      %55 = arith.addf %53, %54 : vector<8x128xf32>
      %56 = arith.mulf %55, %40 : vector<8x128xf32>
      %57 = arith.mulf %56, %42 : vector<8x128xf32>
      %58 = arith.addf %57, %42 : vector<8x128xf32>
      %cst_27 = arith.constant 2.000000e+00 : f32
      %59 = vector.broadcast %cst_27 : f32 to vector<8x128xf32>
      %60 = arith.mulf %59, %58 : vector<8x128xf32>
      %cst_28 = arith.constant 1.57079637 : f32
      %61 = vector.broadcast %cst_28 : f32 to vector<8x128xf32>
      %62 = arith.subf %61, %58 : vector<8x128xf32>
      %63 = arith.select %34, %60, %62 : vector<8x128xi1>, vector<8x128xf32>
      %cst_29 = arith.constant 0.000000e+00 : f32
      %64 = vector.broadcast %cst_29 : f32 to vector<8x128xf32>
      %65 = arith.cmpf olt, %31, %64 : vector<8x128xf32>
      %cst_30 = arith.constant 3.14159274 : f32
      %66 = vector.broadcast %cst_30 : f32 to vector<8x128xf32>
      %67 = arith.subf %66, %63 : vector<8x128xf32>
      %68 = arith.select %65, %67, %63 : vector<8x128xi1>, vector<8x128xf32>
      %c0_31 = arith.constant 0 : index
      %c0_32 = arith.constant 0 : index
      %69 = vector.load %arg5[%c0_31, %c0_32] : memref<8x128xf32, #tpu.memory_space<vmem>>, vector<8x128xf32>
      tpu.vector_store %arg5[%c0_31, %c0_32], %68 {strides = array<i32>} : memref<8x128xf32, #tpu.memory_space<vmem>>, vector<8x128xf32>,
    } else {
    }
    return
  }
  func.func @transform_0(%arg0: i32, %arg1: i32, %arg2: i32) -> (i32, i32) {
    %c0_i32 = arith.constant 0 : i32
    return %arg0, %arg2 : i32, i32
  }
  func.func @transform_1(%arg0: i32, %arg1: i32, %arg2: i32) -> (i32, i32) {
    %c0_i32 = arith.constant 0 : i32
    return %arg2, %arg1 : i32, i32
  }
  func.func @transform_2(%arg0: i32, %arg1: i32, %arg2: i32) -> (i32, i32) {
    %c0_i32 = arith.constant 0 : i32
    return %arg0, %arg1 : i32, i32
  }
}

</mosaic_0001>

<llo_original>
// kernel: tpu_custom_call.1
$region0: #{tpu_custom_call.1}
  #allocation0 [shape = 'u32[]', space=smem, size = 0x4, offset = 0x4, fixed_abs, tag = 'smem constant byte address 0x4 - core index']
  #allocation1 [shape = 'u32[72,128]{1,0:T(1,128)}', space=vmem, size = 0x9000, scoped, tag = 'internal scratch']
  #allocation2 [shape = 'f32[8,1]{1,0:T(8,128)}', space=vmem, size = 0x1000, scoped, tag = 'scratch operand']
  #allocation3 [shape = 'f32[1,128]{1,0:T(1,128)}', space=vmem, size = 0x200, scoped, tag = 'scratch operand']
  %s0 = inlined_call_operand.hbm [shape: f32[8,128], index: 0, kind: input, shape index: {}]
  %s1 = inlined_call_operand.hbm [shape: f32[128,128], index: 1, kind: input, shape index: {}]
  %s2 = inlined_call_operand.hbm [shape: f32[8,128], index: 2, kind: output, shape index: {}]
  %s3 = sld [smem:[#allocation0]]
  $region38: #{tpu_custom_call.1} parent=0
    _
  %s5 = ssub.s32 1, %s3
  %s6 = scalar_select 0, %s5, %s3
  $region1: #{tpu_custom_call.1} parent=0
    #allocation4 [shape = 'u8[4096]{0}', space=vmem, size = 0x1000, scoped, tag = 'input window, operand 0, single buffered']
    #allocation5 [shape = 's32[1]{0}', space=sflag, size = 0x4, scoped, tag = 'scoped memory for tpu_custom_call.1']
    #allocation6 [shape = 's32[1]{0}', space=sflag, size = 0x4, scoped, tag = 'scoped memory for tpu_custom_call.1']
    #allocation7 [shape = 'u8[65536]{0}', space=vmem, size = 0x10000, scoped, tag = 'input window, operand 1, single buffered']
    #allocation8 [shape = 's32[1]{0}', space=sflag, size = 0x4, scoped, tag = 'scoped memory for tpu_custom_call.1']
    #allocation9 [shape = 'u8[4096]{0}', space=vmem, size = 0x1000, scoped, tag = 'output window, operand 0, single buffered']
    %7 = vsyncpa [#allocation5], 0
    %8 = vsyncpa [#allocation8], 0
    %9 = vsyncpa [#allocation6], 0
    // Predicated region
    $region2: #{tpu_custom_call.1} parent=1 // pred_check
      _
    $region3: #{tpu_custom_call.1} parent=1 // pred_check_branch
      %11 = sbr.rel (0) target = $region5
    $region4: #{tpu_custom_call.1} parent=1 // pred_region
      %13 = vsyncadd [#allocation5], 0
      %s15 = sshll.u32 %s0, 4
      %s16 = int_to_ptr.hbm [resolvable:$true] %s15
      %s17 = sshll.u32 [#allocation4], 4
      %s18 = int_to_ptr.vmem [resolvable:$true] %s17
      %20 = dma.hbm_to_vmem [thread:$0]  %s16, 128, %s18, [#allocation5]
    $region5: #{tpu_custom_call.1} parent=1 // pred_fallthru
      _
    // Predicated region
    $region6: #{tpu_custom_call.1} parent=1 // pred_check
      _
    $region7: #{tpu_custom_call.1} parent=1 // pred_check_branch
      %22 = sbr.rel (0) target = $region9
    $region8: #{tpu_custom_call.1} parent=1 // pred_region
      %24 = vsyncadd [#allocation8], 0
      %s25 = sshll.u32 %s1, 4
      %s26 = int_to_ptr.hbm [resolvable:$true] %s25
      %s27 = sshll.u32 [#allocation7], 4
      %s28 = int_to_ptr.vmem [resolvable:$true] %s27
      %33 = dma.hbm_to_vmem [thread:$0]  %s26, 2048, %s28, [#allocation8], 128, 128, 8
    $region9: #{tpu_custom_call.1} parent=1 // pred_fallthru
      _
    // Predicated region
    $region10: #{tpu_custom_call.1} parent=1 // pred_check
      _
    $region11: #{tpu_custom_call.1} parent=1 // pred_check_branch
      %35 = sbr.rel (0) target = $region13
    $region12: #{tpu_custom_call.1} parent=1 // pred_region
      %37 = dma.done [#allocation5], 128
    $region13: #{tpu_custom_call.1} parent=1 // pred_fallthru
      _
    // Predicated region
    $region14: #{tpu_custom_call.1} parent=1 // pred_check
      _
    $region15: #{tpu_custom_call.1} parent=1 // pred_check_branch
      %39 = sbr.rel (0) target = $region17
    $region16: #{tpu_custom_call.1} parent=1 // pred_region
      %41 = dma.done [#allocation8], 2048
    $region17: #{tpu_custom_call.1} parent=1 // pred_fallthru
      _
    %v42 = vld [vmem:[#allocation4] sm:$0xff]
    %v43 = vld [vmem:[#allocation7] sm:$0xff]
    %v44 = vld [vmem:[#allocation7 + $0x8] sm:$0xff]
    %v45 = vld [vmem:[#allocation7 + $0x10] sm:$0xff]
    %v46 = vld [vmem:[#allocation7 + $0x18] sm:$0xff]
    %v47 = vld [vmem:[#allocation7 + $0x20] sm:$0xff]
    %v48 = vld [vmem:[#allocation7 + $0x28] sm:$0xff]
    %v49 = vld [vmem:[#allocation7 + $0x30] sm:$0xff]
    %v50 = vld [vmem:[#allocation7 + $0x38] sm:$0xff]
    %v51 = vld [vmem:[#allocation7 + $0x40] sm:$0xff]
    %v52 = vld [vmem:[#allocation7 + $0x48] sm:$0xff]
    %v53 = vld [vmem:[#allocation7 + $0x50] sm:$0xff]
    %v54 = vld [vmem:[#allocation7 + $0x58] sm:$0xff]
    %v55 = vld [vmem:[#allocation7 + $0x60] sm:$0xff]
    %v56 = vld [vmem:[#allocation7 + $0x68] sm:$0xff]
    %v57 = vld [vmem:[#allocation7 + $0x70] sm:$0xff]
    %v58 = vld [vmem:[#allocation7 + $0x78] sm:$0xff]
    %59 = vmatpush.msra.mxu0 %v58
    %60 = vmatpush.msra.mxu0 %v57
    %61 = vmatpush.msra.mxu0 %v56
    %62 = vmatpush.msra.mxu0 %v55
    %63 = vmatpush.msra.mxu0 %v54
    %64 = vmatpush.msra.mxu0 %v53
    %65 = vmatpush.msra.mxu0 %v52
    %66 = vmatpush.msra.mxu0 %v51
    %67 = vmatpush.msra.mxu0 %v50
    %68 = vmatpush.msra.mxu0 %v49
    %69 = vmatpush.msra.mxu0 %v48
    %70 = vmatpush.msra.mxu0 %v47
    %71 = vmatpush.msra.mxu0 %v46
    %72 = vmatpush.msra.mxu0 %v45
    %73 = vmatpush.msra.mxu0 %v44
    %74 = vmatpush.msra.mxu0 %v43
    %75 = vmatmul.f32.gmra.mxu0 %v42
    %v76 = vpop.f32.mrf.mxu0
    %v77 = vadd.f32 0.0, %v76
    %78 = vdwg.mxu0
    %v79 = vmul.f32 %v42, %v42
    %80 = vadd.xlane.f32.xlu0 %v79
    %v81 = vpop.xlane.xlu0 %80
    %v82 = vmul.f32 %v43, %v43
    %v83 = vmul.f32 %v44, %v44
    %v84 = vmul.f32 %v45, %v45
    %v85 = vmul.f32 %v46, %v46
    %v86 = vmul.f32 %v47, %v47
    %v87 = vmul.f32 %v48, %v48
    %v88 = vmul.f32 %v49, %v49
    %v89 = vmul.f32 %v50, %v50
    %v90 = vmul.f32 %v51, %v51
    %v91 = vmul.f32 %v52, %v52
    %v92 = vmul.f32 %v53, %v53
    %v93 = vmul.f32 %v54, %v54
    %v94 = vmul.f32 %v55, %v55
    %v95 = vmul.f32 %v56, %v56
    %v96 = vmul.f32 %v57, %v57
    %v97 = vmul.f32 %v58, %v58
    %v98 = vadd.f32 %v82, %v83
    %v99 = vadd.f32 %v98, %v84
    %v100 = vadd.f32 %v99, %v85
    %v101 = vadd.f32 %v100, %v86
    %v102 = vadd.f32 %v101, %v87
    %v103 = vadd.f32 %v102, %v88
    %v104 = vadd.f32 %v103, %v89
    %v105 = vadd.f32 %v104, %v90
    %v106 = vadd.f32 %v105, %v91
    %v107 = vadd.f32 %v106, %v92
    %v108 = vadd.f32 %v107, %v93
    %v109 = vadd.f32 %v108, %v94
    %v110 = vadd.f32 %v109, %v95
    %v111 = vadd.f32 %v110, %v96
    %v112 = vadd.f32 %v111, %v97
    %v113 = vrot.slane %v112, 4
    %v114 = vadd.f32 %v112, %v113
    %v115 = vrot.slane %v114, 2
    %v116 = vadd.f32 %v114, %v115
    %v117 = vrot.slane %v116, 1
    %v118 = vadd.f32 %v116, %v117
    %p119 = scmp.eq.s32.totalorder 0, 0
    // Predicated region
    $region18: #{tpu_custom_call.1} parent=1 // pred_check
      %p120 = pneg %p119
    $region19: #{tpu_custom_call.1} parent=1 // pred_check_branch
      %122 = sbr.rel (%p120) target = $region21
    $region20: #{tpu_custom_call.1} parent=1 // pred_region
      %123 = vst [vmem:[#allocation9] sm:$0xff] %v77
      %vm124 = vcmask 7168
      %125 = vst.msk [vmem:[#allocation2] sm:$0xff] %vm124, %v81
      %126 = vst [vmem:[#allocation3] sm:$0x1] %v118
    $region21: #{tpu_custom_call.1} parent=1 // pred_fallthru
      _
    %p127 = scmp.gt.s32.totalorder 0, 0
    // Predicated region
    $region22: #{tpu_custom_call.1} parent=1 // pred_check
      %p128 = pneg %p127
    $region23: #{tpu_custom_call.1} parent=1 // pred_check_branch
      %130 = sbr.rel (%p128) target = $region25
    $region24: #{tpu_custom_call.1} parent=1 // pred_region
      %v131 = vld [vmem:[#allocation9] sm:$0xff]
      %v132 = vadd.f32 %v131, %v77
      %133 = vst [vmem:[#allocation9] sm:$0xff] %v132
      %v134 = vld [vmem:[#allocation2] sm:$0xff]
      %v135 = vadd.f32 %v134, %v81
      %vm136 = vcmask 7168
      %137 = vst.msk [vmem:[#allocation2] sm:$0xff] %vm136, %v135
      %v138 = vld [vmem:[#allocation3] sm:$0x1]
      %v139 = vadd.f32 %v138, %v118
      %140 = vst [vmem:[#allocation3] sm:$0x1] %v139
    $region25: #{tpu_custom_call.1} parent=1 // pred_fallthru
      _
    // Predicated region
    $region26: #{tpu_custom_call.1} parent=1 // pred_check
      %p141 = pneg %p119
    $region27: #{tpu_custom_call.1} parent=1 // pred_check_branch
      %143 = sbr.rel (%p141) target = $region29
    $region28: #{tpu_custom_call.1} parent=1 // pred_region
      %v144 = vld [vmem:[#allocation2] sm:$0xff]
      %v145 = vld [vmem:[#allocation3] sm:$0x1]
      %147 = vset.pattern.permute.xlu0 0
      %148 = vperm.xlu0 %147, %v144
      %v149 = vpop.permute.xlu0 %148
      %v152 = vperm.slane %v145, 0
      %v154 = vmul.f32 %v149, %v152
      %v155 = vmax.f32 %v154, 1e-16
      %v156 = vld [vmem:[#allocation9] sm:$0xff]
      %v157 = vrsqrt.pop %v155
      %v158 = vmul.f32 %v157, %v155
      %v159 = vmul.f32 %v158, %v157
      %v160 = vmul.f32 0.5, %v159
      %v161 = vsub.f32 1.5, %v160
      %v162 = vmul.f32 %v157, %v161
      %vm163 = vweird.f32 %v155
      %vm164 = vweird.f32 %v157
      %vm165 = vmor %vm163, %vm164
      %v166 = vsel %vm165, %v157, %v162
      %v167 = vmul.f32 %v156, %v166
      %v168 = vmax.f32 %v167, -1.0
      %v169 = vmin.f32 %v168, 1.0
      %v170 = vand.u32 2147483647, %v169
      %vm171 = vcmp.gt.f32.partialorder %v170, 0.5
      %v172 = vmul.f32 %v170, %v170
      %v173 = vsub.f32 1.0, %v170
      %v174 = vmul.f32 %v173, 0.5
      %v175 = vsel %vm171, %v174, %v172
      %v176 = vrsqrt.pop %v174
      %v177 = vmul.f32 %v176, %v174
      %v178 = vmul.f32 %v177, %v176
      %v179 = vmul.f32 0.5, %v178
      %v180 = vsub.f32 1.5, %v179
      %v181 = vmul.f32 %v176, %v180
      %v182 = vmul.f32 %v174, %v181
      %vm183 = vcmp.eq.f32.partialorder %v174, inf
      %v184 = vsel %vm183, %v174, %v182
      %vm185 = vcmp.eq.f32.partialorder %v174, 0.0
      %v186 = vand.u32 %v174, 2147483648
      %v187 = vsel %vm185, %v186, %v184
      %v188 = vsel %vm171, %v187, %v170
      %v189 = vmul.f32 %v175, 0.0421632
      %v190 = vadd.f32 %v189, 0.024181312
      %v191 = vmul.f32 %v190, %v175
      %v192 = vadd.f32 %v191, 0.045470025
      %v193 = vmul.f32 %v192, %v175
      %v194 = vadd.f32 %v193, 0.074953005
      %v195 = vmul.f32 %v194, %v175
      %v196 = vadd.f32 %v195, 0.16666752
      %v197 = vmul.f32 %v196, %v175
      %v198 = vmul.f32 %v197, %v188
      %v199 = vadd.f32 %v198, %v188
      %v200 = vmul.f32 %v199, 2.0
      %v201 = vsub.f32 1.5707964, %v199
      %v202 = vsel %vm171, %v200, %v201
      %vm203 = vcmp.lt.f32.partialorder %v169, 0.0
      %v204 = vsub.f32 3.1415927, %v202
      %v205 = vsel %vm203, %v204, %v202
      %206 = vst [vmem:[#allocation9] sm:$0xff] %v205
    $region29: #{tpu_custom_call.1} parent=1 // pred_fallthru
      _
    // Predicated region
    $region30: #{tpu_custom_call.1} parent=1 // pred_check
      _
    $region31: #{tpu_custom_call.1} parent=1 // pred_check_branch
      %208 = sbr.rel (0) target = $region33
    $region32: #{tpu_custom_call.1} parent=1 // pred_region
      %210 = vsyncadd [#allocation6], 0
      %s212 = sshll.u32 [#allocation9], 4
      %s213 = int_to_ptr.vmem [resolvable:$true] %s212
      %s214 = sshll.u32 %s2, 4
      %s215 = int_to_ptr.hbm [resolvable:$true] %s214
      %217 = dma.vmem_to_hbm [thread:$0]  %s213, 128, %s215, [#allocation6]
    $region33: #{tpu_custom_call.1} parent=1 // pred_fallthru
      _
    // Predicated region
    $region34: #{tpu_custom_call.1} parent=1 // pred_check
      _
    $region35: #{tpu_custom_call.1} parent=1 // pred_check_branch
      %219 = sbr.rel (0) target = $region37
    $region36: #{tpu_custom_call.1} parent=1 // pred_region
      %221 = dma.done [#allocation6], 128
    $region37: #{tpu_custom_call.1} parent=1 // pred_fallthru
      _
    %222 = vsyncpa [#allocation5], 1
    %223 = vsyncpa [#allocation8], 1
    %224 = vsyncpa [#allocation6], 1

</llo_original>
